<compile_context>
chip_gen: v7x
topology: tpu7x:2x2x1
jax: 0.10.0
libtpu: 0.0.40
codegen_flags: <defaults>
</compile_context>

<pallas_src>
import functools

import jax
import jax.numpy as jnp
from jax import lax
from jax.experimental import pallas as pl
from jax.experimental.pallas import tpu as pltpu


def _round_up(x, m):
    return ((x + m - 1) // m) * m


# ----------------------------------------------------------------------------
# Pallas kernel: fused (gather + concat + Linear1 + ReLU + Linear2), all
# lane-dense with actions along the lane axis.
# ----------------------------------------------------------------------------
def _action_head_kernel(ai_ref, di_ref, s_ref,     # per-action streams [1, TA]
                        wct_ref, w2_ref,           # resident constants
                        o_ref,
                        *, soldier_row, bias_row):
    ai = ai_ref[...]                       # [1, TA] i32: attack/skip selector row
    di = di_ref[...]                       # [1, TA] i32: defend selector row (-1 = none)
    s = s_ref[...]                         # [1, TA] f32: n_soldiers
    k_pad = wct_ref.shape[1]
    ta = ai.shape[1]

    # Augmented selector, built transposed ([K, TA]) so actions stay on lanes:
    #   rows [0, Npad)      one-hot attack node
    #   rows [Npad, 2Npad)  one-hot defend node
    #   row  2Npad          skip contribution (selected via ai for skip rows)
    #   row  2Npad+1        n_soldiers value
    #   row  2Npad+2        constant 1 (first-layer bias)
    kidx = lax.broadcasted_iota(jnp.int32, (k_pad, ta), 0)
    sel = ((kidx == ai) | (kidx == di)).astype(jnp.float32)
    sel = sel + jnp.where(kidx == soldier_row, s, 0.0)
    sel = sel + (kidx == bias_row).astype(jnp.float32)

    # Whole first layer as a single MXU matmul: [H, K] @ [K, TA] -> [H, TA].
    h = jnp.dot(wct_ref[...], sel, preferred_element_type=jnp.float32)
    h = jnp.maximum(h, 0.0)                # ReLU

    # Rank-1 second layer on the MXU: [1, H] @ [H, TA] -> lane-dense [1, TA].
    o_ref[...] = jnp.dot(w2_ref[...], h, preferred_element_type=jnp.float32)


def _action_head_pallas(ai_sel, di_sel, soldiers, wct, w2_row,
                        *, tile_a, soldier_row, bias_row):
    a_pad = ai_sel.shape[1]
    hid, k_pad = wct.shape
    grid = (a_pad // tile_a,)

    stream = pl.BlockSpec((1, tile_a), lambda i: (0, i))

    out = pl.pallas_call(
        functools.partial(_action_head_kernel,
                          soldier_row=soldier_row, bias_row=bias_row),
        out_shape=jax.ShapeDtypeStruct((1, a_pad), jnp.float32),
        grid=grid,
        in_specs=[
            stream,                                        # attack selectors
            stream,                                        # defend selectors
            stream,                                        # n_soldiers
            pl.BlockSpec((hid, k_pad), lambda i: (0, 0)),  # W_comb^T (resident)
            pl.BlockSpec((1, hid), lambda i: (0, 0)),      # w2 row   (resident)
        ],
        out_specs=stream,
        compiler_params=pltpu.CompilerParams(
            dimension_semantics=("parallel",)),
    )(ai_sel, di_sel, soldiers, wct, w2_row)
    return out


# ----------------------------------------------------------------------------
# Full ActionHead forward: weight folding + padding (glue) + Pallas kernel.
# ----------------------------------------------------------------------------
@functools.partial(jax.jit, static_argnames=("tile_a",))
def action_head_forward(node_embeddings,
                        attack_indices, defend_indices, n_soldiers,
                        skip_attack_embed, skip_defend_embed,
                        w1, b1, w2, b2, tile_a=None):
    n, d = node_embeddings.shape
    a = attack_indices.shape[0]
    hid = w1.shape[1]

    # ---- tiling choice (static, shape-derived) ----
    a128 = _round_up(a, 128)
    if tile_a is None:
        if a128 <= 512:
            tile_a = a128                       # single step: min fixed overhead
        else:
            # >= 2 grid steps so the "parallel" axis shards across v7x's 2 TCs.
            tile_a = min(2048, _round_up(-(-a128 // 2), 128))
    else:
        tile_a = max(128, _round_up(tile_a, 128))
    a_pad = _round_up(a128, tile_a)

    # ---- fold all first-layer weights into one combined matrix ----
    npad = _round_up(n, 8)
    w1f = w1.astype(jnp.float32)
    w1a = w1f[:d, :]
    w1d = w1f[d:2 * d, :]
    w1s = w1f[2 * d:2 * d + 1, :]
    node_pad = jnp.pad(node_embeddings.astype(jnp.float32), ((0, npad - n), (0, 0)))
    proj_a = node_pad @ w1a                                    # [Npad, H]
    proj_d = node_pad @ w1d                                    # [Npad, H]
    skip_b = (skip_attack_embed.astype(jnp.float32)[None, :] @ w1a +
              skip_defend_embed.astype(jnp.float32)[None, :] @ w1d)   # [1, H]
    skip_row = 2 * npad
    soldier_row = 2 * npad + 1
    bias_row = 2 * npad + 2
    k_raw = 2 * npad + 3
    k_pad = _round_up(k_raw, 8)
    w_comb = jnp.concatenate(
        [proj_a, proj_d, skip_b, w1s, b1.astype(jnp.float32)[None, :],
         jnp.zeros((k_pad - k_raw, hid), jnp.float32)], axis=0)        # [K_pad, H]
    wct = w_comb.T                                                     # [H, K_pad]
    w2_row = w2.astype(jnp.float32).reshape(1, hid)

    # ---- selector indices (skip rows select the combined skip row) ----
    skip = attack_indices < 0
    ai_sel = jnp.where(skip, skip_row,
                       jnp.clip(attack_indices, 0, n - 1)).astype(jnp.int32)
    di_sel = jnp.where(skip, -1,
                       jnp.clip(defend_indices, 0, n - 1) + npad).astype(jnp.int32)
    s = n_soldiers.astype(jnp.float32)

    # ---- pad the action axis (padded rows select nothing; sliced off) ----
    pad = a_pad - a
    ai_sel = jnp.pad(ai_sel, (0, pad), constant_values=-1)[None, :]    # [1, A_pad]
    di_sel = jnp.pad(di_sel, (0, pad), constant_values=-1)[None, :]
    s = jnp.pad(s, (0, pad))[None, :]

    out = _action_head_pallas(ai_sel, di_sel, s, wct, w2_row,
                              tile_a=tile_a, soldier_row=soldier_row,
                              bias_row=bias_row)
    return out[0, :a] + b2.astype(jnp.float32)[0]                      # [A]


# ----------------------------------------------------------------------------
# Plain-JAX reference (module semantics) for the correctness check.
# ----------------------------------------------------------------------------
def reference_forward(node_embeddings, attack_indices, defend_indices, n_soldiers,
                      skip_attack_embed, skip_defend_embed, w1, b1, w2, b2):
    n = node_embeddings.shape[0]
    skip = (attack_indices == -1)[:, None]
    att = jnp.where(skip, skip_attack_embed[None, :],
                    node_embeddings[jnp.clip(attack_indices, 0, n - 1)])
    dfd = jnp.where(skip, skip_defend_embed[None, :],
                    node_embeddings[jnp.clip(defend_indices, 0, n - 1)])
    x = jnp.concatenate([att, dfd, n_soldiers[:, None].astype(jnp.float32)], axis=1)
    h = jnp.maximum(x @ w1 + b1, 0.0)
    return (h @ w2 + b2)[:, 0]


if __name__ == "__main__":
    key = jax.random.PRNGKey(0)
    node_embed_dim = 32     # D
    hidden = 128            # fixed by the module
    num_nodes = 10          # N (padded to 16 inside the wrapper)
    num_actions = 19        # A — deliberately not a multiple of 128 (tests padding)

    k_nodes, k_w1, k_b1, k_w2, k_b2, k_sa, k_sd, k_big = jax.random.split(key, 8)

    node_embeddings = jax.random.normal(
        k_nodes, (num_nodes, node_embed_dim), jnp.float32)

    # Deterministic action lookup table: (attack_idx, defend_idx, n_soldiers);
    # first two actions are "skip" actions (attack index == -1).
    # TODO(synk): building these index tensors from the Python lookup-table list
    # is host-side glue in the PyTorch module too; it stays outside the kernel.
    action_lookup_table = [(-1, -1, 0.0), (-1, -1, 0.0)] + [
        (i % num_nodes, (i * 3 + 1) % num_nodes, float(1 + (i % 5)))
        for i in range(num_actions - 2)
    ]
    attack_indices = jnp.array([t[0] for t in action_lookup_table], jnp.int32)
    defend_indices = jnp.array([t[1] for t in action_lookup_table], jnp.int32)
    n_soldiers = jnp.array([t[2] for t in action_lookup_table], jnp.float32)

    # Parameters.  (The module initializes skip embeds to zeros; use small
    # nonzero values here so the skip path is actually exercised numerically.)
    skip_attack_embed = jax.random.normal(k_sa, (node_embed_dim,), jnp.float32) * 0.1
    skip_defend_embed = jax.random.normal(k_sd, (node_embed_dim,), jnp.float32) * 0.1
    in_dim = 2 * node_embed_dim + 1
    w1 = jax.random.normal(k_w1, (in_dim, hidden), jnp.float32) * 0.05
    b1 = jax.random.normal(k_b1, (hidden,), jnp.float32) * 0.05
    w2 = jax.random.normal(k_w2, (hidden, 1), jnp.float32) * 0.05
    b2 = jax.random.normal(k_b2, (1,), jnp.float32) * 0.05

    ref = reference_forward(node_embeddings, attack_indices, defend_indices,
                            n_soldiers, skip_attack_embed, skip_defend_embed,
                            w1, b1, w2, b2)

    # Default (single-tile) path.
    logits = action_head_forward(node_embeddings, attack_indices, defend_indices,
                                 n_soldiers, skip_attack_embed, skip_defend_embed,
                                 w1, b1, w2, b2)
    logits = jax.block_until_ready(logits)
    assert logits.shape == (num_actions,)
    assert jnp.allclose(logits, ref, atol=1e-4, rtol=1e-4), (logits, ref)

    # Multi-step grid path: 300 actions with random skips, tile_a=128 -> 3 steps.
    a_big = 300
    k1, k2, k3, k4 = jax.random.split(k_big, 4)
    att_big = jax.random.randint(k1, (a_big,), 0, num_nodes, jnp.int32)
    dfd_big = jax.random.randint(k2, (a_big,), 0, num_nodes, jnp.int32)
    att_big = jnp.where(jax.random.uniform(k3, (a_big,)) < 0.2, -1, att_big)
    sol_big = jax.random.randint(k4, (a_big,), 0, 6, jnp.int32).astype(jnp.float32)

    ref_big = reference_forward(node_embeddings, att_big, dfd_big, sol_big,
                                skip_attack_embed, skip_defend_embed,
                                w1, b1, w2, b2)
    logits_big = action_head_forward(node_embeddings, att_big, dfd_big, sol_big,
                                     skip_attack_embed, skip_defend_embed,
                                     w1, b1, w2, b2, tile_a=128)
    logits_big = jax.block_until_ready(logits_big)
    assert logits_big.shape == (a_big,)
    assert jnp.allclose(logits_big, ref_big, atol=1e-4, rtol=1e-4), (logits_big, ref_big)

    print("KERNEL_OK")
</pallas_src>

<mosaic_0001>
module attributes {stable_mosaic.version = 11 : i64} {
  func.func @_action_head_kernel(%arg0: i32, %arg1: memref<1x128xi32, #tpu.memory_space<vmem>>, %arg2: memref<1x128xi32, #tpu.memory_space<vmem>>, %arg3: memref<1x128xf32, #tpu.memory_space<vmem>>, %arg4: memref<128x40xf32, #tpu.memory_space<vmem>>, %arg5: memref<1x128xf32, #tpu.memory_space<vmem>>, %arg6: memref<1x128xf32, #tpu.memory_space<vmem>>) attributes {dimension_semantics = [#tpu.dimension_semantics<parallel>], iteration_bounds = array<i64: 1>, scalar_prefetch = 0 : i64, scratch_operands = 0 : i64, tpu.core_type = #tpu.core_type<tc>, window_params = [{transform_indices = @transform_0, window_bounds = array<i64: 1, 128>}, {transform_indices = @transform_1, window_bounds = array<i64: 1, 128>}, {transform_indices = @transform_2, window_bounds = array<i64: 1, 128>}, {pipeline_mode = #tpu.pipeline_mode<synchronous>, transform_indices = @transform_3, window_bounds = array<i64: 128, 40>}, {pipeline_mode = #tpu.pipeline_mode<synchronous>, transform_indices = @transform_4, window_bounds = array<i64: 1, 128>}, {transform_indices = @transform_5, window_bounds = array<i64: 1, 128>}]} {
    %c0 = arith.constant 0 : index
    %c0_0 = arith.constant 0 : index
    %0 = vector.load %arg1[%c0, %c0_0] : memref<1x128xi32, #tpu.memory_space<vmem>>, vector<1x128xi32>
    %c0_1 = arith.constant 0 : index
    %c0_2 = arith.constant 0 : index
    %1 = vector.load %arg2[%c0_1, %c0_2] : memref<1x128xi32, #tpu.memory_space<vmem>>, vector<1x128xi32>
    %c0_3 = arith.constant 0 : index
    %c0_4 = arith.constant 0 : index
    %2 = vector.load %arg3[%c0_3, %c0_4] : memref<1x128xf32, #tpu.memory_space<vmem>>, vector<1x128xf32>
    %3 = tpu.iota {dimensions = array<i32: 0>} : vector<40x128xi32>
    %4 = vector.broadcast %0 : vector<1x128xi32> to vector<40x128xi32>
    %5 = arith.cmpi eq, %3, %4 : vector<40x128xi32>
    %6 = vector.broadcast %1 : vector<1x128xi32> to vector<40x128xi32>
    %7 = arith.cmpi eq, %3, %6 : vector<40x128xi32>
    %8 = arith.ori %5, %7 : vector<40x128xi1>
    %9 = arith.extui %8 : vector<40x128xi1> to vector<40x128xi32>
    %10 = arith.sitofp %9 : vector<40x128xi32> to vector<40x128xf32>
    %c33_i32 = arith.constant 33 : i32
    %11 = vector.broadcast %c33_i32 : i32 to vector<40x128xi32>
    %12 = arith.cmpi eq, %3, %11 : vector<40x128xi32>
    %cst = arith.constant 0.000000e+00 : f32
    %13 = vector.shape_cast %2 : vector<1x128xf32> to vector<1x128xf32>
    %14 = vector.broadcast %13 : vector<1x128xf32> to vector<40x128xf32>
    %15 = vector.broadcast %cst : f32 to vector<40x128xf32>
    %16 = arith.select %12, %14, %15 : vector<40x128xi1>, vector<40x128xf32>
    %17 = arith.addf %10, %16 : vector<40x128xf32>
    %c34_i32 = arith.constant 34 : i32
    %18 = vector.broadcast %c34_i32 : i32 to vector<40x128xi32>
    %19 = arith.cmpi eq, %3, %18 : vector<40x128xi32>
    %20 = arith.extui %19 : vector<40x128xi1> to vector<40x128xi32>
    %21 = arith.sitofp %20 : vector<40x128xi32> to vector<40x128xf32>
    %22 = arith.addf %17, %21 : vector<40x128xf32>
    %c0_5 = arith.constant 0 : index
    %c0_6 = arith.constant 0 : index
    %23 = vector.load %arg4[%c0_5, %c0_6] : memref<128x40xf32, #tpu.memory_space<vmem>>, vector<128x40xf32>
    %cst_7 = arith.constant dense<0.000000e+00> : vector<128x128xf32>
    %24 = tpu.matmul %23, %22, %cst_7 {dimension_numbers = #tpu.dot_dimension_numbers<[1], [0], [0], [1], [0, 0, 1, 1], [], []>} : vector<128x40xf32>, vector<40x128xf32>, vector<128x128xf32> -> vector<128x128xf32>
    %cst_8 = arith.constant 0.000000e+00 : f32
    %25 = vector.broadcast %cst_8 : f32 to vector<128x128xf32>
    %26 = arith.maximumf %24, %25 : vector<128x128xf32>
    %c0_9 = arith.constant 0 : index
    %c0_10 = arith.constant 0 : index
    %27 = vector.load %arg5[%c0_9, %c0_10] : memref<1x128xf32, #tpu.memory_space<vmem>>, vector<1x128xf32>
    %cst_11 = arith.constant dense<0.000000e+00> : vector<1x128xf32>
    %28 = tpu.matmul %27, %26, %cst_11 {dimension_numbers = #tpu.dot_dimension_numbers<[1], [0], [0], [1], [0, 0, 1, 1], [], []>} : vector<1x128xf32>, vector<128x128xf32>, vector<1x128xf32> -> vector<1x128xf32>
    %c0_12 = arith.constant 0 : index
    %c0_13 = arith.constant 0 : index
    %29 = vector.load %arg6[%c0_12, %c0_13] : memref<1x128xf32, #tpu.memory_space<vmem>>, vector<1x128xf32>
    tpu.vector_store %arg6[%c0_12, %c0_13], %28 {strides = array<i32>} : memref<1x128xf32, #tpu.memory_space<vmem>>, vector<1x128xf32>,
    return
  }
  func.func @transform_0(%arg0: i32) -> (i32, i32) {
    %c0_i32 = arith.constant 0 : i32
    %c0_i32_0 = arith.constant 0 : i32
    return %c0_i32, %arg0 : i32, i32
  }
  func.func @transform_1(%arg0: i32) -> (i32, i32) {
    %c0_i32 = arith.constant 0 : i32
    %c0_i32_0 = arith.constant 0 : i32
    return %c0_i32, %arg0 : i32, i32
  }
  func.func @transform_2(%arg0: i32) -> (i32, i32) {
    %c0_i32 = arith.constant 0 : i32
    %c0_i32_0 = arith.constant 0 : i32
    return %c0_i32, %arg0 : i32, i32
  }
  func.func @transform_3(%arg0: i32) -> (i32, i32) {
    %c0_i32 = arith.constant 0 : i32
    %c0_i32_0 = arith.constant 0 : i32
    %c0_i32_1 = arith.constant 0 : i32
    return %c0_i32, %c0_i32_0 : i32, i32
  }
  func.func @transform_4(%arg0: i32) -> (i32, i32) {
    %c0_i32 = arith.constant 0 : i32
    %c0_i32_0 = arith.constant 0 : i32
    %c0_i32_1 = arith.constant 0 : i32
    return %c0_i32, %c0_i32_0 : i32, i32
  }
  func.func @transform_5(%arg0: i32) -> (i32, i32) {
    %c0_i32 = arith.constant 0 : i32
    %c0_i32_0 = arith.constant 0 : i32
    return %c0_i32, %arg0 : i32, i32
  }
}

</mosaic_0001>

<llo_original>
// kernel: action_head_forward.1
$region0: #{action_head_forward.1}
  #allocation0 [shape = 'u32[]', space=smem, size = 0x4, offset = 0x4, fixed_abs, tag = 'smem constant byte address 0x4 - core index']
  #allocation1 [shape = 'u32[144,128]{1,0:T(1,128)}', space=vmem, size = 0x12000, scoped, tag = 'internal scratch']
  %s0 = inlined_call_operand.vmem [shape: s32[1,128], index: 0, kind: input, shape index: {}]
  %s1 = inlined_call_operand.vmem [shape: s32[1,128], index: 1, kind: input, shape index: {}]
  %s2 = inlined_call_operand.vmem [shape: f32[1,128], index: 2, kind: input, shape index: {}]
  %s3 = inlined_call_operand.vmem [shape: f32[128,40], index: 3, kind: input, shape index: {}]
  %s4 = inlined_call_operand.vmem [shape: f32[1,128], index: 4, kind: input, shape index: {}]
  %s5 = inlined_call_operand.vmem [shape: f32[1,128], index: 5, kind: output, shape index: {}]
  %s6 = sld [smem:[#allocation0]]
  $region30: #{action_head_forward.1} parent=0
    _
  %s8 = ssub.s32 1, %s6
  %s9 = scalar_select 0, %s8, %s6
  // Predicated region
  $region2: #{action_head_forward.1} parent=0 // pred_check
    _
  $region3: #{action_head_forward.1} parent=0 // pred_check_branch
    %11 = sbr.rel (0) target = $region5
  $region4: #{action_head_forward.1} parent=0 // pred_region
    _
  $region5: #{action_head_forward.1} parent=0 // pred_fallthru
    _
  // Predicated region
  $region6: #{action_head_forward.1} parent=0 // pred_check
    _
  $region7: #{action_head_forward.1} parent=0 // pred_check_branch
    %13 = sbr.rel (0) target = $region9
  $region8: #{action_head_forward.1} parent=0 // pred_region
    _
  $region9: #{action_head_forward.1} parent=0 // pred_fallthru
    _
  // Predicated region
  $region10: #{action_head_forward.1} parent=0 // pred_check
    _
  $region11: #{action_head_forward.1} parent=0 // pred_check_branch
    %15 = sbr.rel (0) target = $region13
  $region12: #{action_head_forward.1} parent=0 // pred_region
    _
  $region13: #{action_head_forward.1} parent=0 // pred_fallthru
    _
  // Predicated region
  $region14: #{action_head_forward.1} parent=0 // pred_check
    _
  $region15: #{action_head_forward.1} parent=0 // pred_check_branch
    %17 = sbr.rel (0) target = $region17
  $region16: #{action_head_forward.1} parent=0 // pred_region
    _
  $region17: #{action_head_forward.1} parent=0 // pred_fallthru
    _
  // Predicated region
  $region18: #{action_head_forward.1} parent=0 // pred_check
    _
  $region19: #{action_head_forward.1} parent=0 // pred_check_branch
    %19 = sbr.rel (0) target = $region21
  $region20: #{action_head_forward.1} parent=0 // pred_region
    _
  $region21: #{action_head_forward.1} parent=0 // pred_fallthru
    _
  %v20 = vld [vmem:[%s0] sm:$0x1]
  %v21 = vld [vmem:[%s1] sm:$0x1]
  %v22 = vld [vmem:[%s2] sm:$0x1]
  %v23 = vlaneseq
  %v24 = vshrl.u32 %v23, 7
  %v25 = vadd.s32 %v24, 8
  %v26 = vadd.s32 %v24, 16
  %v27 = vadd.s32 %v24, 24
  %v28 = vadd.s32 %v24, 32
  %v29 = vlaneseq
  %v30 = vshrl.u32 %v29, 7
  %v31 = vsub.s32 0, %v30
  %v32 = vrot.slane %v20, %v31
  %vm33 = vcmp.eq.s32.totalorder %v24, %v32
  %vm34 = vcmp.eq.s32.totalorder %v25, %v32
  %vm35 = vcmp.eq.s32.totalorder %v26, %v32
  %vm36 = vcmp.eq.s32.totalorder %v27, %v32
  %vm37 = vcmp.eq.s32.totalorder %v28, %v32
  %v38 = vlaneseq
  %v39 = vshrl.u32 %v38, 7
  %v40 = vsub.s32 0, %v39
  %v41 = vrot.slane %v21, %v40
  %vm42 = vcmp.eq.s32.totalorder %v24, %v41
  %vm43 = vcmp.eq.s32.totalorder %v25, %v41
  %vm44 = vcmp.eq.s32.totalorder %v26, %v41
  %vm45 = vcmp.eq.s32.totalorder %v27, %v41
  %vm46 = vcmp.eq.s32.totalorder %v28, %v41
  %vm47 = vmor %vm33, %vm42
  %vm48 = vmor %vm34, %vm43
  %vm49 = vmor %vm35, %vm44
  %vm50 = vmor %vm36, %vm45
  %vm51 = vmor %vm37, %vm46
  %v52 = vsel %vm47, 1, 0
  %v53 = vsel %vm48, 1, 0
  %v54 = vsel %vm49, 1, 0
  %v55 = vsel %vm50, 1, 0
  %v56 = vsel %vm51, 1, 0
  %v57 = vcvt.s32.f32 %v52
  %v58 = vcvt.s32.f32 %v53
  %v59 = vcvt.s32.f32 %v54
  %v60 = vcvt.s32.f32 %v55
  %v61 = vcvt.s32.f32 %v56
  %vm62 = vcmp.eq.s32.totalorder %v24, 33
  %vm63 = vcmp.eq.s32.totalorder %v25, 33
  %vm64 = vcmp.eq.s32.totalorder %v26, 33
  %vm65 = vcmp.eq.s32.totalorder %v27, 33
  %vm66 = vcmp.eq.s32.totalorder %v28, 33
  %v68 = vlaneseq
  %v69 = vshrl.u32 %v68, 7
  %v70 = vsub.s32 0, %v69
  %v71 = vrot.slane %v22, %v70
  %v73 = vsel %vm62, %v71, 0.0
  %v74 = vsel %vm63, %v71, 0.0
  %v75 = vsel %vm64, %v71, 0.0
  %v76 = vsel %vm65, %v71, 0.0
  %v77 = vsel %vm66, %v71, 0.0
  %v78 = vadd.f32 %v57, %v73
  %v79 = vadd.f32 %v58, %v74
  %v80 = vadd.f32 %v59, %v75
  %v81 = vadd.f32 %v60, %v76
  %v82 = vadd.f32 %v61, %v77
  %vm83 = vcmp.eq.s32.totalorder %v24, 34
  %vm84 = vcmp.eq.s32.totalorder %v25, 34
  %vm85 = vcmp.eq.s32.totalorder %v26, 34
  %vm86 = vcmp.eq.s32.totalorder %v27, 34
  %vm87 = vcmp.eq.s32.totalorder %v28, 34
  %v88 = vsel %vm83, 1, 0
  %v89 = vsel %vm84, 1, 0
  %v90 = vsel %vm85, 1, 0
  %v91 = vsel %vm86, 1, 0
  %v92 = vsel %vm87, 1, 0
  %v93 = vcvt.s32.f32 %v88
  %v94 = vcvt.s32.f32 %v89
  %v95 = vcvt.s32.f32 %v90
  %v96 = vcvt.s32.f32 %v91
  %v97 = vcvt.s32.f32 %v92
  %v98 = vadd.f32 %v78, %v93
  %v99 = vadd.f32 %v79, %v94
  %v100 = vadd.f32 %v80, %v95
  %v101 = vadd.f32 %v81, %v96
  %v102 = vadd.f32 %v82, %v97
  %v103 = vld [vmem:[%s3] sm:$0xff]
  %v104 = vld [vmem:[%s3 + $0x8] sm:$0xff]
  %v105 = vld [vmem:[%s3 + $0x10] sm:$0xff]
  %v106 = vld [vmem:[%s3 + $0x18] sm:$0xff]
  %v107 = vld [vmem:[%s3 + $0x20] sm:$0xff]
  %v108 = vld [vmem:[%s3 + $0x28] sm:$0xff]
  %v109 = vld [vmem:[%s3 + $0x30] sm:$0xff]
  %v110 = vld [vmem:[%s3 + $0x38] sm:$0xff]
  %v111 = vld [vmem:[%s3 + $0x40] sm:$0xff]
  %v112 = vld [vmem:[%s3 + $0x48] sm:$0xff]
  %v113 = vld [vmem:[%s3 + $0x50] sm:$0xff]
  %v114 = vld [vmem:[%s3 + $0x58] sm:$0xff]
  %v115 = vld [vmem:[%s3 + $0x60] sm:$0xff]
  %v116 = vld [vmem:[%s3 + $0x68] sm:$0xff]
  %v117 = vld [vmem:[%s3 + $0x70] sm:$0xff]
  %v118 = vld [vmem:[%s3 + $0x78] sm:$0xff]
  %vm119 = vcmask 326656
  %v121 = vsel %vm119, %v103, 0
  %v124 = vsel %vm119, %v104, 0
  %v127 = vsel %vm119, %v105, 0
  %v130 = vsel %vm119, %v106, 0
  %v133 = vsel %vm119, %v107, 0
  %v136 = vsel %vm119, %v108, 0
  %v139 = vsel %vm119, %v109, 0
  %v142 = vsel %vm119, %v110, 0
  %v145 = vsel %vm119, %v111, 0
  %v148 = vsel %vm119, %v112, 0
  %v151 = vsel %vm119, %v113, 0
  %v154 = vsel %vm119, %v114, 0
  %v157 = vsel %vm119, %v115, 0
  %v160 = vsel %vm119, %v116, 0
  %v163 = vsel %vm119, %v117, 0
  %v166 = vsel %vm119, %v118, 0
  %168 = vmatprep.subr.mxu0 0.0
  %169 = vmatpush1.msra.mxu0 %v98
  %170 = vmatprep.subr.mxu0 0.0
  %171 = vmatpush1.msra.mxu0 %v99
  %172 = vmatprep.subr.mxu0 0.0
  %173 = vmatpush1.msra.mxu0 %v100
  %174 = vmatprep.subr.mxu0 0.0
  %175 = vmatpush1.msra.mxu0 %v101
  %176 = vmatprep.subr.mxu0 0.0
  %177 = vmatpush1.msra.mxu0 %v102
  %178 = vmatprep.subr.mxu0 0.0
  %179 = vmatpush1.msra.mxu0 0.0
  %180 = vmatprep.subr.mxu0 0.0
  %181 = vmatpush1.msra.mxu0 0.0
  %182 = vmatprep.subr.mxu0 0.0
  %183 = vmatpush1.msra.mxu0 0.0
  %184 = vmatprep.subr.mxu0 0.0
  %185 = vmatpush1.msra.mxu0 0.0
  %186 = vmatprep.subr.mxu0 0.0
  %187 = vmatpush1.msra.mxu0 0.0
  %188 = vmatprep.subr.mxu0 0.0
  %189 = vmatpush1.msra.mxu0 0.0
  %190 = vmatprep.subr.mxu0 0.0
  %191 = vmatpush1.msra.mxu0 0.0
  %192 = vmatprep.subr.mxu0 0.0
  %193 = vmatpush1.msra.mxu0 0.0
  %194 = vmatprep.subr.mxu0 0.0
  %195 = vmatpush1.msra.mxu0 0.0
  %196 = vmatprep.subr.mxu0 0.0
  %197 = vmatpush1.msra.mxu0 0.0
  %198 = vmatprep.subr.mxu0 0.0
  %199 = vmatpush1.msra.mxu0 0.0
  %200 = vmatprep.subr.mxu0 0.0
  %201 = vmatpush1.msra.mxu0 0.0
  %202 = vmatprep.subr.mxu0 0.0
  %203 = vmatpush1.msra.mxu0 0.0
  %204 = vmatprep.subr.mxu0 0.0
  %205 = vmatpush1.msra.mxu0 0.0
  %206 = vmatprep.subr.mxu0 0.0
  %207 = vmatpush1.msra.mxu0 0.0
  %208 = vmatprep.subr.mxu0 0.0
  %209 = vmatpush1.msra.mxu0 0.0
  %210 = vmatprep.subr.mxu0 0.0
  %211 = vmatpush1.msra.mxu0 0.0
  %212 = vmatprep.subr.mxu0 0.0
  %213 = vmatpush1.msra.mxu0 0.0
  %214 = vmatprep.subr.mxu0 0.0
  %215 = vmatpush1.msra.mxu0 0.0
  %216 = vmatprep.subr.mxu0 0.0
  %217 = vmatpush1.msra.mxu0 0.0
  %218 = vmatprep.subr.mxu0 0.0
  %219 = vmatpush1.msra.mxu0 0.0
  %220 = vmatprep.subr.mxu0 0.0
  %221 = vmatpush1.msra.mxu0 0.0
  %222 = vmatprep.subr.mxu0 0.0
  %223 = vmatpush1.msra.mxu0 0.0
  %224 = vmatprep.subr.mxu0 0.0
  %225 = vmatpush1.msra.mxu0 0.0
  %226 = vmatprep.subr.mxu0 0.0
  %227 = vmatpush1.msra.mxu0 0.0
  %228 = vmatprep.subr.mxu0 0.0
  %229 = vmatpush1.msra.mxu0 0.0
  %230 = vmatprep.subr.mxu0 0.0
  %231 = vmatpush1.msra.mxu0 0.0
  %232 = vmatprep.mubr.f32.mxu0 0.0
  %233 = vmatmul.mubr.f32.gmra.mrb[0].mxu0 %v121
  %v234 = vpop.f32.mrb[0].mxu0
  %v235 = vadd.f32 0.0, %v234
  %v236 = vpop.f32.mrb[0].mxu0
  %237 = vmatprep.mubr.f32.mxu0 0.0
  %238 = vmatmul.mubr.f32.gmra.mrb[0].mxu0 %v124
  %v239 = vpop.f32.mrb[0].mxu0
  %v240 = vadd.f32 0.0, %v239
  %v241 = vpop.f32.mrb[0].mxu0
  %242 = vmatprep.mubr.f32.mxu0 0.0
  %243 = vmatmul.mubr.f32.gmra.mrb[0].mxu0 %v127
  %v244 = vpop.f32.mrb[0].mxu0
  %v245 = vadd.f32 0.0, %v244
  %v246 = vpop.f32.mrb[0].mxu0
  %247 = vmatprep.mubr.f32.mxu0 0.0
  %248 = vmatmul.mubr.f32.gmra.mrb[0].mxu0 %v130
  %v249 = vpop.f32.mrb[0].mxu0
  %v250 = vadd.f32 0.0, %v249
  %v251 = vpop.f32.mrb[0].mxu0
  %252 = vmatprep.mubr.f32.mxu0 0.0
  %253 = vmatmul.mubr.f32.gmra.mrb[0].mxu0 %v133
  %v254 = vpop.f32.mrb[0].mxu0
  %v255 = vadd.f32 0.0, %v254
  %v256 = vpop.f32.mrb[0].mxu0
  %257 = vmatprep.mubr.f32.mxu0 0.0
  %258 = vmatmul.mubr.f32.gmra.mrb[0].mxu0 %v136
  %v259 = vpop.f32.mrb[0].mxu0
  %v260 = vadd.f32 0.0, %v259
  %v261 = vpop.f32.mrb[0].mxu0
  %262 = vmatprep.mubr.f32.mxu0 0.0
  %263 = vmatmul.mubr.f32.gmra.mrb[0].mxu0 %v139
  %v264 = vpop.f32.mrb[0].mxu0
  %v265 = vadd.f32 0.0, %v264
  %v266 = vpop.f32.mrb[0].mxu0
  %267 = vmatprep.mubr.f32.mxu0 0.0
  %268 = vmatmul.mubr.f32.gmra.mrb[0].mxu0 %v142
  %v269 = vpop.f32.mrb[0].mxu0
  %v270 = vadd.f32 0.0, %v269
  %v271 = vpop.f32.mrb[0].mxu0
  %272 = vmatprep.mubr.f32.mxu0 0.0
  %273 = vmatmul.mubr.f32.gmra.mrb[0].mxu0 %v145
  %v274 = vpop.f32.mrb[0].mxu0
  %v275 = vadd.f32 0.0, %v274
  %v276 = vpop.f32.mrb[0].mxu0
  %277 = vmatprep.mubr.f32.mxu0 0.0
  %278 = vmatmul.mubr.f32.gmra.mrb[0].mxu0 %v148
  %v279 = vpop.f32.mrb[0].mxu0
  %v280 = vadd.f32 0.0, %v279
  %v281 = vpop.f32.mrb[0].mxu0
  %282 = vmatprep.mubr.f32.mxu0 0.0
  %283 = vmatmul.mubr.f32.gmra.mrb[0].mxu0 %v151
  %v284 = vpop.f32.mrb[0].mxu0
  %v285 = vadd.f32 0.0, %v284
  %v286 = vpop.f32.mrb[0].mxu0
  %287 = vmatprep.mubr.f32.mxu0 0.0
  %288 = vmatmul.mubr.f32.gmra.mrb[0].mxu0 %v154
  %v289 = vpop.f32.mrb[0].mxu0
  %v290 = vadd.f32 0.0, %v289
  %v291 = vpop.f32.mrb[0].mxu0
  %292 = vmatprep.mubr.f32.mxu0 0.0
  %293 = vmatmul.mubr.f32.gmra.mrb[0].mxu0 %v157
  %v294 = vpop.f32.mrb[0].mxu0
  %v295 = vadd.f32 0.0, %v294
  %v296 = vpop.f32.mrb[0].mxu0
  %297 = vmatprep.mubr.f32.mxu0 0.0
  %298 = vmatmul.mubr.f32.gmra.mrb[0].mxu0 %v160
  %v299 = vpop.f32.mrb[0].mxu0
  %v300 = vadd.f32 0.0, %v299
  %v301 = vpop.f32.mrb[0].mxu0
  %302 = vmatprep.mubr.f32.mxu0 0.0
  %303 = vmatmul.mubr.f32.gmra.mrb[0].mxu0 %v163
  %v304 = vpop.f32.mrb[0].mxu0
  %v305 = vadd.f32 0.0, %v304
  %v306 = vpop.f32.mrb[0].mxu0
  %307 = vmatprep.mubr.f32.mxu0 0.0
  %308 = vmatmul.mubr.f32.gmra.mrb[0].mxu0 %v166
  %v309 = vpop.f32.mrb[0].mxu0
  %v310 = vadd.f32 0.0, %v309
  %v311 = vpop.f32.mrb[0].mxu0
  %312 = vdwg.mxu0
  %v313 = vmax.f32 %v235, 0.0
  %v314 = vmax.f32 %v240, 0.0
  %v315 = vmax.f32 %v245, 0.0
  %v316 = vmax.f32 %v250, 0.0
  %v317 = vmax.f32 %v255, 0.0
  %v318 = vmax.f32 %v260, 0.0
  %v319 = vmax.f32 %v265, 0.0
  %v320 = vmax.f32 %v270, 0.0
  %v321 = vmax.f32 %v275, 0.0
  %v322 = vmax.f32 %v280, 0.0
  %v323 = vmax.f32 %v285, 0.0
  %v324 = vmax.f32 %v290, 0.0
  %v325 = vmax.f32 %v295, 0.0
  %v326 = vmax.f32 %v300, 0.0
  %v327 = vmax.f32 %v305, 0.0
  %v328 = vmax.f32 %v310, 0.0
  %v329 = vld [vmem:[%s4] sm:$0x1]
  %330 = vmatprep.subr.mxu0 0.0
  %331 = vmatpush1.msra.mxu0 %v313
  %332 = vmatprep.subr.mxu0 0.0
  %333 = vmatpush1.msra.mxu0 %v314
  %334 = vmatprep.subr.mxu0 0.0
  %335 = vmatpush1.msra.mxu0 %v315
  %336 = vmatprep.subr.mxu0 0.0
  %337 = vmatpush1.msra.mxu0 %v316
  %338 = vmatprep.subr.mxu0 0.0
  %339 = vmatpush1.msra.mxu0 %v317
  %340 = vmatprep.subr.mxu0 0.0
  %341 = vmatpush1.msra.mxu0 %v318
  %342 = vmatprep.subr.mxu0 0.0
  %343 = vmatpush1.msra.mxu0 %v319
  %344 = vmatprep.subr.mxu0 0.0
  %345 = vmatpush1.msra.mxu0 %v320
  %346 = vmatprep.subr.mxu0 0.0
  %347 = vmatpush1.msra.mxu0 %v321
  %348 = vmatprep.subr.mxu0 0.0
  %349 = vmatpush1.msra.mxu0 %v322
  %350 = vmatprep.subr.mxu0 0.0
  %351 = vmatpush1.msra.mxu0 %v323
  %352 = vmatprep.subr.mxu0 0.0
  %353 = vmatpush1.msra.mxu0 %v324
  %354 = vmatprep.subr.mxu0 0.0
  %355 = vmatpush1.msra.mxu0 %v325
  %356 = vmatprep.subr.mxu0 0.0
  %357 = vmatpush1.msra.mxu0 %v326
  %358 = vmatprep.subr.mxu0 0.0
  %359 = vmatpush1.msra.mxu0 %v327
  %360 = vmatprep.subr.mxu0 0.0
  %361 = vmatpush1.msra.mxu0 %v328
  %362 = vmatprep.subr.mxu0 0.0
  %363 = vmatpush1.msra.mxu0 0.0
  %364 = vmatprep.subr.mxu0 0.0
  %365 = vmatpush1.msra.mxu0 0.0
  %366 = vmatprep.subr.mxu0 0.0
  %367 = vmatpush1.msra.mxu0 0.0
  %368 = vmatprep.subr.mxu0 0.0
  %369 = vmatpush1.msra.mxu0 0.0
  %370 = vmatprep.subr.mxu0 0.0
  %371 = vmatpush1.msra.mxu0 0.0
  %372 = vmatprep.subr.mxu0 0.0
  %373 = vmatpush1.msra.mxu0 0.0
  %374 = vmatprep.subr.mxu0 0.0
  %375 = vmatpush1.msra.mxu0 0.0
  %376 = vmatprep.subr.mxu0 0.0
  %377 = vmatpush1.msra.mxu0 0.0
  %378 = vmatprep.subr.mxu0 0.0
  %379 = vmatpush1.msra.mxu0 0.0
  %380 = vmatprep.subr.mxu0 0.0
  %381 = vmatpush1.msra.mxu0 0.0
  %382 = vmatprep.subr.mxu0 0.0
  %383 = vmatpush1.msra.mxu0 0.0
  %384 = vmatprep.subr.mxu0 0.0
  %385 = vmatpush1.msra.mxu0 0.0
  %386 = vmatprep.subr.mxu0 0.0
  %387 = vmatpush1.msra.mxu0 0.0
  %388 = vmatprep.subr.mxu0 0.0
  %389 = vmatpush1.msra.mxu0 0.0
  %390 = vmatprep.subr.mxu0 0.0
  %391 = vmatpush1.msra.mxu0 0.0
  %392 = vmatprep.subr.mxu0 0.0
  %393 = vmatpush1.msra.mxu0 0.0
  %394 = vmatprep.mubr.f32.mxu0 0.0
  %395 = vmatmul.mubr.f32.gmra.mrb[0].mxu0 %v329
  %v396 = vpop.f32.mrb[0].mxu0
  %v397 = vadd.f32 0.0, %v396
  %v398 = vpop.f32.mrb[0].mxu0
  %399 = vdwg.mxu0
  %400 = vst [vmem:[%s5] sm:$0x1] %v397
  // Predicated region
  $region22: #{action_head_forward.1} parent=0 // pred_check
    _
  $region23: #{action_head_forward.1} parent=0 // pred_check_branch
    %402 = sbr.rel (0) target = $region25
  $region24: #{action_head_forward.1} parent=0 // pred_region
    _
  $region25: #{action_head_forward.1} parent=0 // pred_fallthru
    _
  // Predicated region
  $region26: #{action_head_forward.1} parent=0 // pred_check
    _
  $region27: #{action_head_forward.1} parent=0 // pred_check_branch
    %404 = sbr.rel (0) target = $region29
  $region28: #{action_head_forward.1} parent=0 // pred_region
    _
  $region29: #{action_head_forward.1} parent=0 // pred_fallthru
    _

</llo_original>
